<compile_context>
chip_gen: v7x
topology: tpu7x:2x2x1
jax: 0.10.0
libtpu: 0.0.40
codegen_flags: <defaults>
</compile_context>

<pallas_src>
import functools

import jax
import jax.numpy as jnp
from jax import lax
from jax.experimental import pallas as pl
from jax.experimental.pallas import tpu as pltpu

# --- small synthetic config (same structure as Config, scaled down) ---
D_VOCAB = 1024      # cfg.d_vocab (50257) scaled down
D_MODEL = 128       # cfg.d_model (768) scaled down; multiple of 128 -> lane-dense stores
SEQ = 8
BATCH = 2
INIT_RANGE = 0.02


def _round_up(x: int, m: int) -> int:
    return (x + m - 1) // m * m


def embed_kernel(tok_ref, w_ref, o_ref, *, t_blk: int, unroll):
    """Gather `t_blk` embedding rows for this grid step.

    tok_ref : SMEM (N_pad,) int32 — scalar-prefetched flat token ids
    w_ref   : VMEM (V, D)         — full embedding table, resident (constant block)
    o_ref   : VMEM (t_blk, D)     — lane-dense output block
    """
    base = pl.program_id(0) * t_blk

    def body(j, carry):
        tok = tok_ref[base + j]                       # scalar read from SMEM
        o_ref[pl.ds(j, 1), :] = w_ref[pl.ds(tok, 1), :]   # dynamic row gather in VMEM
        return carry

    lax.fori_loop(0, t_blk, body, 0, unroll=unroll)


def embed_forward(tokens, W_E, *, t_blk: int = 512):
    """tokens: (B, S) int32, W_E: (V, D) float32 -> (B, S, D) float32."""
    B, S = tokens.shape
    V, D = W_E.shape
    n_tok = B * S

    # Coarsened token blocks: big enough to amortize the ~0.35 us/step overhead,
    # rounded to the sublane granule (8) so the output BlockSpec stays legal.
    t_blk = min(t_blk, _round_up(n_tok, 8))
    n_pad = _round_up(n_tok, t_blk)
    n_blocks = n_pad // t_blk

    tokens_flat = tokens.reshape(-1).astype(jnp.int32)
    if n_pad != n_tok:
        tokens_flat = jnp.pad(tokens_flat, (0, n_pad - n_tok))  # pad with token 0 (in range)

    kernel = functools.partial(embed_kernel, t_blk=t_blk, unroll=(t_blk <= 64))

    out_flat = pl.pallas_call(
        kernel,
        out_shape=jax.ShapeDtypeStruct((n_pad, D), W_E.dtype),
        grid_spec=pltpu.PrefetchScalarGridSpec(
            num_scalar_prefetch=1,                       # tokens -> SMEM before the grid runs
            grid=(n_blocks,),                            # one step per token block
            in_specs=[
                # Whole table as one VMEM block; constant block index -> loaded once,
                # stays resident across every grid step (no re-DMA).
                pl.BlockSpec((V, D), lambda i, tok: (0, 0)),
            ],
            out_specs=pl.BlockSpec((t_blk, D), lambda i, tok: (i, 0)),
        ),
        compiler_params=pltpu.CompilerParams(
            dimension_semantics=("parallel",),           # token blocks are independent
        ),
    )(tokens_flat, W_E)

    return out_flat[:n_tok].reshape(B, S, D)


def embed_reference(tokens, W_E):
    """Plain-JAX mirror of the PyTorch forward: W_E[tokens]."""
    return jnp.take(W_E, tokens, axis=0)


if __name__ == "__main__":
    key = jax.random.PRNGKey(0)
    k_tok, k_w = jax.random.split(key)

    tokens = jax.random.randint(k_tok, (BATCH, SEQ), 0, D_VOCAB, dtype=jnp.int32)
    # deterministic parameter init matching nn.init.normal_(std=init_range)
    W_E = jax.random.normal(k_w, (D_VOCAB, D_MODEL), dtype=jnp.float32) * INIT_RANGE

    out = embed_forward(tokens, W_E)
    out = jax.block_until_ready(out)

    ref = embed_reference(tokens, W_E)
    assert out.shape == (BATCH, SEQ, D_MODEL)
    assert jnp.allclose(out, ref), "mismatch vs reference"

    print("KERNEL_OK")
</pallas_src>

<mosaic_0001>
module attributes {stable_mosaic.version = 11 : i64} {
  func.func @embed_kernel(%arg0: i32, %arg1: memref<16xi32, #tpu.memory_space<smem>>, %arg2: memref<1024x128xf32, #tpu.memory_space<vmem>>, %arg3: memref<16x128xf32, #tpu.memory_space<vmem>>) attributes {dimension_semantics = [#tpu.dimension_semantics<parallel>], iteration_bounds = array<i64: 1>, scalar_prefetch = 1 : i64, scratch_operands = 0 : i64, tpu.core_type = #tpu.core_type<tc>, window_params = [{pipeline_mode = #tpu.pipeline_mode<synchronous>, transform_indices = @transform_0, window_bounds = array<i64: 1024, 128>}, {transform_indices = @transform_1, window_bounds = array<i64: 16, 128>}]} {
    %c16_i32 = arith.constant 16 : i32
    %0 = arith.muli %arg0, %c16_i32 : i32
    %c0_i32 = arith.constant 0 : i32
    %1 = arith.addi %0, %c0_i32 : i32
    %2 = arith.index_cast %1 : i32 to index
    %3 = memref.load %arg1[%2] : memref<16xi32, #tpu.memory_space<smem>>
    %4 = arith.index_cast %3 : i32 to index
    %c0 = arith.constant 0 : index
    %5 = vector.load %arg2[%4, %c0] : memref<1024x128xf32, #tpu.memory_space<vmem>>, vector<1x128xf32>
    %6 = arith.index_cast %c0_i32 : i32 to index
    %c0_0 = arith.constant 0 : index
    %7 = vector.load %arg3[%6, %c0_0] : memref<16x128xf32, #tpu.memory_space<vmem>>, vector<1x128xf32>
    tpu.vector_store %arg3[%6, %c0_0], %5 {strides = array<i32>} : memref<16x128xf32, #tpu.memory_space<vmem>>, vector<1x128xf32>,
    %c1_i32 = arith.constant 1 : i32
    %8 = arith.addi %0, %c1_i32 : i32
    %9 = arith.index_cast %8 : i32 to index
    %10 = memref.load %arg1[%9] : memref<16xi32, #tpu.memory_space<smem>>
    %11 = arith.index_cast %10 : i32 to index
    %c0_1 = arith.constant 0 : index
    %12 = vector.load %arg2[%11, %c0_1] : memref<1024x128xf32, #tpu.memory_space<vmem>>, vector<1x128xf32>
    %13 = arith.index_cast %c1_i32 : i32 to index
    %c0_2 = arith.constant 0 : index
    %14 = vector.load %arg3[%13, %c0_2] : memref<16x128xf32, #tpu.memory_space<vmem>>, vector<1x128xf32>
    tpu.vector_store %arg3[%13, %c0_2], %12 {strides = array<i32>} : memref<16x128xf32, #tpu.memory_space<vmem>>, vector<1x128xf32>,
    %c2_i32 = arith.constant 2 : i32
    %15 = arith.addi %0, %c2_i32 : i32
    %16 = arith.index_cast %15 : i32 to index
    %17 = memref.load %arg1[%16] : memref<16xi32, #tpu.memory_space<smem>>
    %18 = arith.index_cast %17 : i32 to index
    %c0_3 = arith.constant 0 : index
    %19 = vector.load %arg2[%18, %c0_3] : memref<1024x128xf32, #tpu.memory_space<vmem>>, vector<1x128xf32>
    %20 = arith.index_cast %c2_i32 : i32 to index
    %c0_4 = arith.constant 0 : index
    %21 = vector.load %arg3[%20, %c0_4] : memref<16x128xf32, #tpu.memory_space<vmem>>, vector<1x128xf32>
    tpu.vector_store %arg3[%20, %c0_4], %19 {strides = array<i32>} : memref<16x128xf32, #tpu.memory_space<vmem>>, vector<1x128xf32>,
    %c3_i32 = arith.constant 3 : i32
    %22 = arith.addi %0, %c3_i32 : i32
    %23 = arith.index_cast %22 : i32 to index
    %24 = memref.load %arg1[%23] : memref<16xi32, #tpu.memory_space<smem>>
    %25 = arith.index_cast %24 : i32 to index
    %c0_5 = arith.constant 0 : index
    %26 = vector.load %arg2[%25, %c0_5] : memref<1024x128xf32, #tpu.memory_space<vmem>>, vector<1x128xf32>
    %27 = arith.index_cast %c3_i32 : i32 to index
    %c0_6 = arith.constant 0 : index
    %28 = vector.load %arg3[%27, %c0_6] : memref<16x128xf32, #tpu.memory_space<vmem>>, vector<1x128xf32>
    tpu.vector_store %arg3[%27, %c0_6], %26 {strides = array<i32>} : memref<16x128xf32, #tpu.memory_space<vmem>>, vector<1x128xf32>,
    %c4_i32 = arith.constant 4 : i32
    %29 = arith.addi %0, %c4_i32 : i32
    %30 = arith.index_cast %29 : i32 to index
    %31 = memref.load %arg1[%30] : memref<16xi32, #tpu.memory_space<smem>>
    %32 = arith.index_cast %31 : i32 to index
    %c0_7 = arith.constant 0 : index
    %33 = vector.load %arg2[%32, %c0_7] : memref<1024x128xf32, #tpu.memory_space<vmem>>, vector<1x128xf32>
    %34 = arith.index_cast %c4_i32 : i32 to index
    %c0_8 = arith.constant 0 : index
    %35 = vector.load %arg3[%34, %c0_8] : memref<16x128xf32, #tpu.memory_space<vmem>>, vector<1x128xf32>
    tpu.vector_store %arg3[%34, %c0_8], %33 {strides = array<i32>} : memref<16x128xf32, #tpu.memory_space<vmem>>, vector<1x128xf32>,
    %c5_i32 = arith.constant 5 : i32
    %36 = arith.addi %0, %c5_i32 : i32
    %37 = arith.index_cast %36 : i32 to index
    %38 = memref.load %arg1[%37] : memref<16xi32, #tpu.memory_space<smem>>
    %39 = arith.index_cast %38 : i32 to index
    %c0_9 = arith.constant 0 : index
    %40 = vector.load %arg2[%39, %c0_9] : memref<1024x128xf32, #tpu.memory_space<vmem>>, vector<1x128xf32>
    %41 = arith.index_cast %c5_i32 : i32 to index
    %c0_10 = arith.constant 0 : index
    %42 = vector.load %arg3[%41, %c0_10] : memref<16x128xf32, #tpu.memory_space<vmem>>, vector<1x128xf32>
    tpu.vector_store %arg3[%41, %c0_10], %40 {strides = array<i32>} : memref<16x128xf32, #tpu.memory_space<vmem>>, vector<1x128xf32>,
    %c6_i32 = arith.constant 6 : i32
    %43 = arith.addi %0, %c6_i32 : i32
    %44 = arith.index_cast %43 : i32 to index
    %45 = memref.load %arg1[%44] : memref<16xi32, #tpu.memory_space<smem>>
    %46 = arith.index_cast %45 : i32 to index
    %c0_11 = arith.constant 0 : index
    %47 = vector.load %arg2[%46, %c0_11] : memref<1024x128xf32, #tpu.memory_space<vmem>>, vector<1x128xf32>
    %48 = arith.index_cast %c6_i32 : i32 to index
    %c0_12 = arith.constant 0 : index
    %49 = vector.load %arg3[%48, %c0_12] : memref<16x128xf32, #tpu.memory_space<vmem>>, vector<1x128xf32>
    tpu.vector_store %arg3[%48, %c0_12], %47 {strides = array<i32>} : memref<16x128xf32, #tpu.memory_space<vmem>>, vector<1x128xf32>,
    %c7_i32 = arith.constant 7 : i32
    %50 = arith.addi %0, %c7_i32 : i32
    %51 = arith.index_cast %50 : i32 to index
    %52 = memref.load %arg1[%51] : memref<16xi32, #tpu.memory_space<smem>>
    %53 = arith.index_cast %52 : i32 to index
    %c0_13 = arith.constant 0 : index
    %54 = vector.load %arg2[%53, %c0_13] : memref<1024x128xf32, #tpu.memory_space<vmem>>, vector<1x128xf32>
    %55 = arith.index_cast %c7_i32 : i32 to index
    %c0_14 = arith.constant 0 : index
    %56 = vector.load %arg3[%55, %c0_14] : memref<16x128xf32, #tpu.memory_space<vmem>>, vector<1x128xf32>
    tpu.vector_store %arg3[%55, %c0_14], %54 {strides = array<i32>} : memref<16x128xf32, #tpu.memory_space<vmem>>, vector<1x128xf32>,
    %c8_i32 = arith.constant 8 : i32
    %57 = arith.addi %0, %c8_i32 : i32
    %58 = arith.index_cast %57 : i32 to index
    %59 = memref.load %arg1[%58] : memref<16xi32, #tpu.memory_space<smem>>
    %60 = arith.index_cast %59 : i32 to index
    %c0_15 = arith.constant 0 : index
    %61 = vector.load %arg2[%60, %c0_15] : memref<1024x128xf32, #tpu.memory_space<vmem>>, vector<1x128xf32>
    %62 = arith.index_cast %c8_i32 : i32 to index
    %c0_16 = arith.constant 0 : index
    %63 = vector.load %arg3[%62, %c0_16] : memref<16x128xf32, #tpu.memory_space<vmem>>, vector<1x128xf32>
    tpu.vector_store %arg3[%62, %c0_16], %61 {strides = array<i32>} : memref<16x128xf32, #tpu.memory_space<vmem>>, vector<1x128xf32>,
    %c9_i32 = arith.constant 9 : i32
    %64 = arith.addi %0, %c9_i32 : i32
    %65 = arith.index_cast %64 : i32 to index
    %66 = memref.load %arg1[%65] : memref<16xi32, #tpu.memory_space<smem>>
    %67 = arith.index_cast %66 : i32 to index
    %c0_17 = arith.constant 0 : index
    %68 = vector.load %arg2[%67, %c0_17] : memref<1024x128xf32, #tpu.memory_space<vmem>>, vector<1x128xf32>
    %69 = arith.index_cast %c9_i32 : i32 to index
    %c0_18 = arith.constant 0 : index
    %70 = vector.load %arg3[%69, %c0_18] : memref<16x128xf32, #tpu.memory_space<vmem>>, vector<1x128xf32>
    tpu.vector_store %arg3[%69, %c0_18], %68 {strides = array<i32>} : memref<16x128xf32, #tpu.memory_space<vmem>>, vector<1x128xf32>,
    %c10_i32 = arith.constant 10 : i32
    %71 = arith.addi %0, %c10_i32 : i32
    %72 = arith.index_cast %71 : i32 to index
    %73 = memref.load %arg1[%72] : memref<16xi32, #tpu.memory_space<smem>>
    %74 = arith.index_cast %73 : i32 to index
    %c0_19 = arith.constant 0 : index
    %75 = vector.load %arg2[%74, %c0_19] : memref<1024x128xf32, #tpu.memory_space<vmem>>, vector<1x128xf32>
    %76 = arith.index_cast %c10_i32 : i32 to index
    %c0_20 = arith.constant 0 : index
    %77 = vector.load %arg3[%76, %c0_20] : memref<16x128xf32, #tpu.memory_space<vmem>>, vector<1x128xf32>
    tpu.vector_store %arg3[%76, %c0_20], %75 {strides = array<i32>} : memref<16x128xf32, #tpu.memory_space<vmem>>, vector<1x128xf32>,
    %c11_i32 = arith.constant 11 : i32
    %78 = arith.addi %0, %c11_i32 : i32
    %79 = arith.index_cast %78 : i32 to index
    %80 = memref.load %arg1[%79] : memref<16xi32, #tpu.memory_space<smem>>
    %81 = arith.index_cast %80 : i32 to index
    %c0_21 = arith.constant 0 : index
    %82 = vector.load %arg2[%81, %c0_21] : memref<1024x128xf32, #tpu.memory_space<vmem>>, vector<1x128xf32>
    %83 = arith.index_cast %c11_i32 : i32 to index
    %c0_22 = arith.constant 0 : index
    %84 = vector.load %arg3[%83, %c0_22] : memref<16x128xf32, #tpu.memory_space<vmem>>, vector<1x128xf32>
    tpu.vector_store %arg3[%83, %c0_22], %82 {strides = array<i32>} : memref<16x128xf32, #tpu.memory_space<vmem>>, vector<1x128xf32>,
    %c12_i32 = arith.constant 12 : i32
    %85 = arith.addi %0, %c12_i32 : i32
    %86 = arith.index_cast %85 : i32 to index
    %87 = memref.load %arg1[%86] : memref<16xi32, #tpu.memory_space<smem>>
    %88 = arith.index_cast %87 : i32 to index
    %c0_23 = arith.constant 0 : index
    %89 = vector.load %arg2[%88, %c0_23] : memref<1024x128xf32, #tpu.memory_space<vmem>>, vector<1x128xf32>
    %90 = arith.index_cast %c12_i32 : i32 to index
    %c0_24 = arith.constant 0 : index
    %91 = vector.load %arg3[%90, %c0_24] : memref<16x128xf32, #tpu.memory_space<vmem>>, vector<1x128xf32>
    tpu.vector_store %arg3[%90, %c0_24], %89 {strides = array<i32>} : memref<16x128xf32, #tpu.memory_space<vmem>>, vector<1x128xf32>,
    %c13_i32 = arith.constant 13 : i32
    %92 = arith.addi %0, %c13_i32 : i32
    %93 = arith.index_cast %92 : i32 to index
    %94 = memref.load %arg1[%93] : memref<16xi32, #tpu.memory_space<smem>>
    %95 = arith.index_cast %94 : i32 to index
    %c0_25 = arith.constant 0 : index
    %96 = vector.load %arg2[%95, %c0_25] : memref<1024x128xf32, #tpu.memory_space<vmem>>, vector<1x128xf32>
    %97 = arith.index_cast %c13_i32 : i32 to index
    %c0_26 = arith.constant 0 : index
    %98 = vector.load %arg3[%97, %c0_26] : memref<16x128xf32, #tpu.memory_space<vmem>>, vector<1x128xf32>
    tpu.vector_store %arg3[%97, %c0_26], %96 {strides = array<i32>} : memref<16x128xf32, #tpu.memory_space<vmem>>, vector<1x128xf32>,
    %c14_i32 = arith.constant 14 : i32
    %99 = arith.addi %0, %c14_i32 : i32
    %100 = arith.index_cast %99 : i32 to index
    %101 = memref.load %arg1[%100] : memref<16xi32, #tpu.memory_space<smem>>
    %102 = arith.index_cast %101 : i32 to index
    %c0_27 = arith.constant 0 : index
    %103 = vector.load %arg2[%102, %c0_27] : memref<1024x128xf32, #tpu.memory_space<vmem>>, vector<1x128xf32>
    %104 = arith.index_cast %c14_i32 : i32 to index
    %c0_28 = arith.constant 0 : index
    %105 = vector.load %arg3[%104, %c0_28] : memref<16x128xf32, #tpu.memory_space<vmem>>, vector<1x128xf32>
    tpu.vector_store %arg3[%104, %c0_28], %103 {strides = array<i32>} : memref<16x128xf32, #tpu.memory_space<vmem>>, vector<1x128xf32>,
    %c15_i32 = arith.constant 15 : i32
    %106 = arith.addi %0, %c15_i32 : i32
    %107 = arith.index_cast %106 : i32 to index
    %108 = memref.load %arg1[%107] : memref<16xi32, #tpu.memory_space<smem>>
    %109 = arith.index_cast %108 : i32 to index
    %c0_29 = arith.constant 0 : index
    %110 = vector.load %arg2[%109, %c0_29] : memref<1024x128xf32, #tpu.memory_space<vmem>>, vector<1x128xf32>
    %111 = arith.index_cast %c15_i32 : i32 to index
    %c0_30 = arith.constant 0 : index
    %112 = vector.load %arg3[%111, %c0_30] : memref<16x128xf32, #tpu.memory_space<vmem>>, vector<1x128xf32>
    tpu.vector_store %arg3[%111, %c0_30], %110 {strides = array<i32>} : memref<16x128xf32, #tpu.memory_space<vmem>>, vector<1x128xf32>,
    %c16_i32_31 = arith.constant 16 : i32
    return
  }
  func.func @transform_0(%arg0: i32, %arg1: memref<16xi32, #tpu.memory_space<smem>>) -> (i32, i32) {
    %c0_i32 = arith.constant 0 : i32
    %c0_i32_0 = arith.constant 0 : i32
    %c0_i32_1 = arith.constant 0 : i32
    return %c0_i32, %c0_i32_0 : i32, i32
  }
  func.func @transform_1(%arg0: i32, %arg1: memref<16xi32, #tpu.memory_space<smem>>) -> (i32, i32) {
    %c0_i32 = arith.constant 0 : i32
    %c0_i32_0 = arith.constant 0 : i32
    return %arg0, %c0_i32 : i32, i32
  }
}

</mosaic_0001>

<llo_original>
// kernel: tpu_custom_call.1
$region0: #{tpu_custom_call.1}
  #allocation0 [shape = 'u32[]', space=smem, size = 0x4, offset = 0x4, fixed_abs, tag = 'smem constant byte address 0x4 - core index']
  #allocation1 [shape = 'u32[144,128]{1,0:T(1,128)}', space=vmem, size = 0x12000, scoped, tag = 'internal scratch']
  #allocation2 [shape = 's32[1]{0}', space=sflag, size = 0x4, scoped, tag = 'scoped memory for tpu_custom_call.1']
  #allocation3 [shape = 'u8[512]{0}', space=smem, size = 0x200, scoped, tag = 'prefetched SMEM operand 0']
  %s0 = inlined_call_operand.hbm [shape: s32[16], index: 0, kind: input, shape index: {}]
  %s1 = inlined_call_operand.hbm [shape: f32[1024,128], index: 1, kind: input, shape index: {}]
  %s2 = inlined_call_operand.hbm [shape: f32[16,128], index: 2, kind: output, shape index: {}]
  %s3 = sld [smem:[#allocation0]]
  $region18: #{tpu_custom_call.1} parent=0
    _
  %s5 = ssub.s32 1, %s3
  %s6 = scalar_select 0, %s5, %s3
  %8 = dma.hbm_to_smem %s0, 16, [#allocation3], [#allocation2]
  %9 = dma.done [#allocation2], 16
  %10 = sfence
  $region1: #{tpu_custom_call.1} parent=0
    #allocation4 [shape = 'u8[524288]{0}', space=vmem, size = 0x80000, scoped, tag = 'input window, operand 1, single buffered']
    #allocation5 [shape = 's32[1]{0}', space=sflag, size = 0x4, scoped, tag = 'scoped memory for tpu_custom_call.1']
    #allocation6 [shape = 's32[1]{0}', space=sflag, size = 0x4, scoped, tag = 'scoped memory for tpu_custom_call.1']
    #allocation7 [shape = 'u8[8192]{0}', space=vmem, size = 0x2000, scoped, tag = 'output window, operand 0, single buffered']
    %11 = vsyncpa [#allocation5], 0
    %12 = vsyncpa [#allocation6], 0
    // Predicated region
    $region2: #{tpu_custom_call.1} parent=1 // pred_check
      _
    $region3: #{tpu_custom_call.1} parent=1 // pred_check_branch
      %14 = sbr.rel (0) target = $region5
    $region4: #{tpu_custom_call.1} parent=1 // pred_region
      %s16 = ssub.s32 16384, 16384
      %17 = vsyncadd [#allocation5], %s16
      %s18 = sshll.u32 [#allocation4], 4
      %s19 = int_to_ptr.vmem [resolvable:$true] %s18
      %24 = dma.hbm_to_vmem [thread:$0]  %s1, 16384, %s19, [#allocation5], 128, 128, 8
    $region5: #{tpu_custom_call.1} parent=1 // pred_fallthru
      _
    // Predicated region
    $region6: #{tpu_custom_call.1} parent=1 // pred_check
      _
    $region7: #{tpu_custom_call.1} parent=1 // pred_check_branch
      %26 = sbr.rel (0) target = $region9
    $region8: #{tpu_custom_call.1} parent=1 // pred_region
      %27 = dma.done [#allocation5], 16384
    $region9: #{tpu_custom_call.1} parent=1 // pred_fallthru
      _
    %s28 = smul.u32 0, 16
    %s29 = sld [smem:[#allocation3 + %s28]]
    %s30 = scalar_lea.vmem [#allocation4], %s29
    %v31 = vld [vmem:[%s30] sm:$0x1]
    %32 = vst [vmem:[#allocation7] sm:$0x1] %v31
    %s33 = sadd.s32 %s28, 1
    %s34 = sld [smem:[#allocation3 + %s33]]
    %s35 = scalar_lea.vmem [#allocation4], %s34
    %v36 = vld [vmem:[%s35] sm:$0x1]
    %37 = vst [vmem:[#allocation7 + $0x1] sm:$0x1] %v36
    %s38 = sadd.s32 %s28, 2
    %s39 = sld [smem:[#allocation3 + %s38]]
    %s40 = scalar_lea.vmem [#allocation4], %s39
    %v41 = vld [vmem:[%s40] sm:$0x1]
    %42 = vst [vmem:[#allocation7 + $0x2] sm:$0x1] %v41
    %s43 = sadd.s32 %s28, 3
    %s44 = sld [smem:[#allocation3 + %s43]]
    %s45 = scalar_lea.vmem [#allocation4], %s44
    %v46 = vld [vmem:[%s45] sm:$0x1]
    %47 = vst [vmem:[#allocation7 + $0x3] sm:$0x1] %v46
    %s48 = sadd.s32 %s28, 4
    %s49 = sld [smem:[#allocation3 + %s48]]
    %s50 = scalar_lea.vmem [#allocation4], %s49
    %v51 = vld [vmem:[%s50] sm:$0x1]
    %52 = vst [vmem:[#allocation7 + $0x4] sm:$0x1] %v51
    %s53 = sadd.s32 %s28, 5
    %s54 = sld [smem:[#allocation3 + %s53]]
    %s55 = scalar_lea.vmem [#allocation4], %s54
    %v56 = vld [vmem:[%s55] sm:$0x1]
    %57 = vst [vmem:[#allocation7 + $0x5] sm:$0x1] %v56
    %s58 = sadd.s32 %s28, 6
    %s59 = sld [smem:[#allocation3 + %s58]]
    %s60 = scalar_lea.vmem [#allocation4], %s59
    %v61 = vld [vmem:[%s60] sm:$0x1]
    %62 = vst [vmem:[#allocation7 + $0x6] sm:$0x1] %v61
    %s63 = sadd.s32 %s28, 7
    %s64 = sld [smem:[#allocation3 + %s63]]
    %s65 = scalar_lea.vmem [#allocation4], %s64
    %v66 = vld [vmem:[%s65] sm:$0x1]
    %67 = vst [vmem:[#allocation7 + $0x7] sm:$0x1] %v66
    %s68 = sadd.s32 %s28, 8
    %s69 = sld [smem:[#allocation3 + %s68]]
    %s70 = scalar_lea.vmem [#allocation4], %s69
    %v71 = vld [vmem:[%s70] sm:$0x1]
    %72 = vst [vmem:[#allocation7 + $0x8] sm:$0x1] %v71
    %s73 = sadd.s32 %s28, 9
    %s74 = sld [smem:[#allocation3 + %s73]]
    %s75 = scalar_lea.vmem [#allocation4], %s74
    %v76 = vld [vmem:[%s75] sm:$0x1]
    %77 = vst [vmem:[#allocation7 + $0x9] sm:$0x1] %v76
    %s78 = sadd.s32 %s28, 10
    %s79 = sld [smem:[#allocation3 + %s78]]
    %s80 = scalar_lea.vmem [#allocation4], %s79
    %v81 = vld [vmem:[%s80] sm:$0x1]
    %82 = vst [vmem:[#allocation7 + $0xa] sm:$0x1] %v81
    %s83 = sadd.s32 %s28, 11
    %s84 = sld [smem:[#allocation3 + %s83]]
    %s85 = scalar_lea.vmem [#allocation4], %s84
    %v86 = vld [vmem:[%s85] sm:$0x1]
    %87 = vst [vmem:[#allocation7 + $0xb] sm:$0x1] %v86
    %s88 = sadd.s32 %s28, 12
    %s89 = sld [smem:[#allocation3 + %s88]]
    %s90 = scalar_lea.vmem [#allocation4], %s89
    %v91 = vld [vmem:[%s90] sm:$0x1]
    %92 = vst [vmem:[#allocation7 + $0xc] sm:$0x1] %v91
    %s93 = sadd.s32 %s28, 13
    %s94 = sld [smem:[#allocation3 + %s93]]
    %s95 = scalar_lea.vmem [#allocation4], %s94
    %v96 = vld [vmem:[%s95] sm:$0x1]
    %97 = vst [vmem:[#allocation7 + $0xd] sm:$0x1] %v96
    %s98 = sadd.s32 %s28, 14
    %s99 = sld [smem:[#allocation3 + %s98]]
    %s100 = scalar_lea.vmem [#allocation4], %s99
    %v101 = vld [vmem:[%s100] sm:$0x1]
    %102 = vst [vmem:[#allocation7 + $0xe] sm:$0x1] %v101
    %s103 = sadd.s32 %s28, 15
    %s104 = sld [smem:[#allocation3 + %s103]]
    %s105 = scalar_lea.vmem [#allocation4], %s104
    %v106 = vld [vmem:[%s105] sm:$0x1]
    %107 = vst [vmem:[#allocation7 + $0xf] sm:$0x1] %v106
    // Predicated region
    $region10: #{tpu_custom_call.1} parent=1 // pred_check
      _
    $region11: #{tpu_custom_call.1} parent=1 // pred_check_branch
      %109 = sbr.rel (0) target = $region13
    $region12: #{tpu_custom_call.1} parent=1 // pred_region
      %s111 = ssub.s32 256, 256
      %112 = vsyncadd [#allocation6], %s111
      %s113 = sshll.u32 [#allocation7], 4
      %s114 = int_to_ptr.vmem [resolvable:$true] %s113
      %119 = dma.vmem_to_hbm [thread:$0]  %s114, 256, %s2, [#allocation6], 128, 128, 8
    $region13: #{tpu_custom_call.1} parent=1 // pred_fallthru
      _
    // Predicated region
    $region14: #{tpu_custom_call.1} parent=1 // pred_check
      _
    $region15: #{tpu_custom_call.1} parent=1 // pred_check_branch
      %121 = sbr.rel (0) target = $region17
    $region16: #{tpu_custom_call.1} parent=1 // pred_region
      %122 = dma.done [#allocation6], 256
    $region17: #{tpu_custom_call.1} parent=1 // pred_fallthru
      _
    %123 = vsyncpa [#allocation5], 1
    %124 = vsyncpa [#allocation6], 1

</llo_original>
